<compile_context>
chip_gen: v7x
topology: tpu7x:2x2x1
jax: 0.10.0
libtpu: 0.0.40
codegen_flags: <defaults>
</compile_context>

<pallas_src>
import jax
import jax.numpy as jnp
from jax.experimental import pallas as pl
from jax.experimental.pallas import tpu as pltpu


def _make_kernel(H, W):
    L = H * W

    def kernel(wcol_ref, x_ref, o_ref):
        # wcol_ref: (1, L) int32, column index within each row (loop-invariant).
        # x_ref   : (bt, L) input planes, flattened lane-dense.
        # o_ref   : (bt, L) output planes.
        bt = x_ref.shape[0]
        x = x_ref[...]
        zero = jnp.zeros((), x.dtype)

        # Loop-invariant boundary masks.
        wcol = jnp.broadcast_to(wcol_ref[...], (bt, L))          # column in row
        flat = jax.lax.broadcasted_iota(jnp.int32, (bt, L), 1)   # flat position
        has_left = wcol > 0
        has_right = wcol < (W - 1)
        has_up = flat >= W
        has_down = flat < (H - 1) * W

        # Horizontal neighbors via lane rolls (positive shifts only), with the
        # wrapped-around values masked to zero (= zero padding).
        left = jnp.where(has_left, pltpu.roll(x, 1, axis=1), zero)       # x[h, w-1]
        right = jnp.where(has_right, pltpu.roll(x, L - 1, axis=1), zero) # x[h, w+1]

        # Separable horizontal passes.
        hdiff = left - right                 # [1, 0, -1] horizontally
        hsum = (left + right) + (x + x)      # [1, 2, 1]  horizontally

        # Vertical neighbors of the intermediates: rolls by +-W rows.
        up_d = jnp.where(has_up, pltpu.roll(hdiff, W, axis=1), zero)
        dn_d = jnp.where(has_down, pltpu.roll(hdiff, L - W, axis=1), zero)
        up_s = jnp.where(has_up, pltpu.roll(hsum, W, axis=1), zero)
        dn_s = jnp.where(has_down, pltpu.roll(hsum, L - W, axis=1), zero)

        # convx weight (cross-correlation): [[1,0,-1],[2,0,-2],[1,0,-1]]
        sobelx = (up_d + dn_d) + (hdiff + hdiff)   # vertical [1, 2, 1] of hdiff
        # convy weight = convx.T: [[1,2,1],[0,0,0],[-1,-2,-1]]
        sobely = up_s - dn_s                       # vertical [1, 0, -1] of hsum

        o_ref[...] = (jnp.abs(sobelx) + jnp.abs(sobely)).astype(o_ref.dtype)

    return kernel


def _choose_block_b(B, L, itemsize,
                    target_block_bytes=2 << 20, max_block_bytes=3 << 20):
    """Pick bt = number of flattened planes per grid step.

    Constraints: bt divides B, and bt is a multiple of the sublane packing
    (8 for f32, 16 for bf16) or equal to B (full-extent blocks bypass the
    (8,128) rule).  Sizing uses *padded* tile shapes, targets ~2 MiB/step to
    amortize per-step overhead, caps the block so the double-buffered in+out
    footprint (~4 blocks) stays inside v5e's 16 MiB scoped default and v7x's
    64 MiB-per-TC VMEM, and prefers an even step count >= 2 so the parallel
    grid axis shards cleanly across v7x's two TensorCores.
    """
    sub = max(8, 32 // max(itemsize, 1))
    lane_padded = ((L + 127) // 128) * 128

    def block_bytes(bt):
        btp = ((bt + sub - 1) // sub) * sub
        return btp * lane_padded * itemsize

    cands = sorted({d for d in range(1, B + 1)
                    if B % d == 0 and (d % sub == 0 or d == B)})
    fits = [d for d in cands if block_bytes(d) <= max_block_bytes]
    if not fits:
        # TODO(synk): for very large planes (e.g. HD images), tile H into
        # multiples of 8/16 rows and W into multiples of 128 with a 1-row /
        # 1-col halo instead of whole-plane blocks.
        raise NotImplementedError(
            f"sobelxy: plane of {L} elements too large for whole-plane blocks")

    def steps(d):
        return B // d

    def pick(group):
        small = [d for d in group if block_bytes(d) <= target_block_bytes]
        return max(small) if small else min(group)

    even = [d for d in fits if steps(d) >= 2 and steps(d) % 2 == 0]
    multi = [d for d in fits if steps(d) >= 2]
    if even:
        return pick(even)
    if multi:
        return pick(multi)
    return pick(fits)


def sobelxy(x):
    """x: (N, C, H, W) float array -> (N, C, H, W), |Sobel_x(x)| + |Sobel_y(x)|."""
    N, C, H, W = x.shape
    B = N * C
    L = H * W
    xb = x.reshape(B, L)  # contiguous reshape: no HBM pass, lane-dense planes
    bt = _choose_block_b(B, L, x.dtype.itemsize)
    grid = (B // bt,)

    # Column-index-within-row, precomputed once on the host (loop-invariant
    # mask source; its block index never changes so it is DMA'd only once).
    wcol = (jnp.arange(L, dtype=jnp.int32) % W).reshape(1, L)

    out = pl.pallas_call(
        _make_kernel(H, W),
        out_shape=jax.ShapeDtypeStruct((B, L), x.dtype),
        grid_spec=pltpu.PrefetchScalarGridSpec(
            num_scalar_prefetch=0,
            grid=grid,
            in_specs=[
                pl.BlockSpec((1, L), lambda i: (0, 0)),   # wcol (invariant)
                pl.BlockSpec((bt, L), lambda i: (i, 0)),  # input planes
            ],
            out_specs=pl.BlockSpec((bt, L), lambda i: (i, 0)),
        ),
        compiler_params=pltpu.CompilerParams(
            dimension_semantics=("parallel",),
            vmem_limit_bytes=32 << 20,
        ),
    )(wcol, xb)
    return out.reshape(N, C, H, W)


def _sobelxy_ref(x):
    """Pure-JAX reference (same math as the PyTorch module) for correctness."""
    N, C, H, W = x.shape
    xp = jnp.pad(x, ((0, 0), (0, 0), (1, 1), (1, 1)))
    tl = xp[:, :, 0:H,     0:W]
    tc = xp[:, :, 0:H,     1:W + 1]
    tr = xp[:, :, 0:H,     2:W + 2]
    ml = xp[:, :, 1:H + 1, 0:W]
    mr = xp[:, :, 1:H + 1, 2:W + 2]
    bl = xp[:, :, 2:H + 2, 0:W]
    bc = xp[:, :, 2:H + 2, 1:W + 1]
    br = xp[:, :, 2:H + 2, 2:W + 2]
    sobelx = (tl - tr) + 2.0 * (ml - mr) + (bl - br)
    sobely = (tl + 2.0 * tc + tr) - (bl + 2.0 * bc + br)
    return jnp.abs(sobelx) + jnp.abs(sobely)


if __name__ == "__main__":
    key = jax.random.PRNGKey(0)
    N, C, H, W = 2, 4, 16, 16
    x = jax.random.normal(key, (N, C, H, W), dtype=jnp.float32)

    out = jax.block_until_ready(sobelxy(x))

    ref = _sobelxy_ref(x)
    assert out.shape == (N, C, H, W)
    assert jnp.allclose(out, ref, atol=1e-5, rtol=1e-5)

    print("KERNEL_OK")
</pallas_src>

<mosaic_0001>
module attributes {stable_mosaic.version = 11 : i64} {
  func.func @kernel(%arg0: i32, %arg1: memref<1x256xi32, #tpu.memory_space<vmem>>, %arg2: memref<8x256xf32, #tpu.memory_space<vmem>>, %arg3: memref<8x256xf32, #tpu.memory_space<vmem>>) attributes {dimension_semantics = [#tpu.dimension_semantics<parallel>], iteration_bounds = array<i64: 1>, scalar_prefetch = 0 : i64, scratch_operands = 0 : i64, tpu.core_type = #tpu.core_type<tc>, window_params = [{pipeline_mode = #tpu.pipeline_mode<synchronous>, transform_indices = @transform_0, window_bounds = array<i64: 1, 256>}, {transform_indices = @transform_1, window_bounds = array<i64: 8, 256>}, {transform_indices = @transform_2, window_bounds = array<i64: 8, 256>}]} {
    %c0 = arith.constant 0 : index
    %c0_0 = arith.constant 0 : index
    %0 = vector.load %arg2[%c0, %c0_0] : memref<8x256xf32, #tpu.memory_space<vmem>>, vector<8x256xf32>
    %c0_1 = arith.constant 0 : index
    %c0_2 = arith.constant 0 : index
    %1 = vector.load %arg1[%c0_1, %c0_2] : memref<1x256xi32, #tpu.memory_space<vmem>>, vector<1x256xi32>
    %2 = vector.shape_cast %1 : vector<1x256xi32> to vector<1x256xi32>
    %3 = vector.broadcast %2 : vector<1x256xi32> to vector<8x256xi32>
    %4 = tpu.iota {dimensions = array<i32: 1>} : vector<8x256xi32>
    %c0_i32 = arith.constant 0 : i32
    %5 = vector.broadcast %c0_i32 : i32 to vector<8x256xi32>
    %6 = arith.cmpi sgt, %3, %5 : vector<8x256xi32>
    %c15_i32 = arith.constant 15 : i32
    %7 = vector.broadcast %c15_i32 : i32 to vector<8x256xi32>
    %8 = arith.cmpi slt, %3, %7 : vector<8x256xi32>
    %c16_i32 = arith.constant 16 : i32
    %9 = vector.broadcast %c16_i32 : i32 to vector<8x256xi32>
    %10 = arith.cmpi sge, %4, %9 : vector<8x256xi32>
    %c240_i32 = arith.constant 240 : i32
    %11 = vector.broadcast %c240_i32 : i32 to vector<8x256xi32>
    %12 = arith.cmpi slt, %4, %11 : vector<8x256xi32>
    %c1_i32 = arith.constant 1 : i32
    %13 = tpu.dynamic_rotate %0 by %c1_i32 dim 1 : vector<8x256xf32>, i32 -> vector<8x256xf32>
    %cst = arith.constant 0.000000e+00 : f32
    %14 = vector.broadcast %cst : f32 to vector<8x256xf32>
    %15 = arith.select %6, %13, %14 : vector<8x256xi1>, vector<8x256xf32>
    %c255_i32 = arith.constant 255 : i32
    %16 = tpu.dynamic_rotate %0 by %c255_i32 dim 1 : vector<8x256xf32>, i32 -> vector<8x256xf32>
    %cst_3 = arith.constant 0.000000e+00 : f32
    %17 = vector.broadcast %cst_3 : f32 to vector<8x256xf32>
    %18 = arith.select %8, %16, %17 : vector<8x256xi1>, vector<8x256xf32>
    %19 = arith.subf %15, %18 : vector<8x256xf32>
    %20 = arith.addf %15, %18 : vector<8x256xf32>
    %21 = arith.addf %0, %0 : vector<8x256xf32>
    %22 = arith.addf %20, %21 : vector<8x256xf32>
    %c16_i32_4 = arith.constant 16 : i32
    %23 = tpu.dynamic_rotate %19 by %c16_i32_4 dim 1 : vector<8x256xf32>, i32 -> vector<8x256xf32>
    %cst_5 = arith.constant 0.000000e+00 : f32
    %24 = vector.broadcast %cst_5 : f32 to vector<8x256xf32>
    %25 = arith.select %10, %23, %24 : vector<8x256xi1>, vector<8x256xf32>
    %c240_i32_6 = arith.constant 240 : i32
    %26 = tpu.dynamic_rotate %19 by %c240_i32_6 dim 1 : vector<8x256xf32>, i32 -> vector<8x256xf32>
    %cst_7 = arith.constant 0.000000e+00 : f32
    %27 = vector.broadcast %cst_7 : f32 to vector<8x256xf32>
    %28 = arith.select %12, %26, %27 : vector<8x256xi1>, vector<8x256xf32>
    %c16_i32_8 = arith.constant 16 : i32
    %29 = tpu.dynamic_rotate %22 by %c16_i32_8 dim 1 : vector<8x256xf32>, i32 -> vector<8x256xf32>
    %cst_9 = arith.constant 0.000000e+00 : f32
    %30 = vector.broadcast %cst_9 : f32 to vector<8x256xf32>
    %31 = arith.select %10, %29, %30 : vector<8x256xi1>, vector<8x256xf32>
    %c240_i32_10 = arith.constant 240 : i32
    %32 = tpu.dynamic_rotate %22 by %c240_i32_10 dim 1 : vector<8x256xf32>, i32 -> vector<8x256xf32>
    %cst_11 = arith.constant 0.000000e+00 : f32
    %33 = vector.broadcast %cst_11 : f32 to vector<8x256xf32>
    %34 = arith.select %12, %32, %33 : vector<8x256xi1>, vector<8x256xf32>
    %35 = arith.addf %25, %28 : vector<8x256xf32>
    %36 = arith.addf %19, %19 : vector<8x256xf32>
    %37 = arith.addf %35, %36 : vector<8x256xf32>
    %38 = arith.subf %31, %34 : vector<8x256xf32>
    %39 = math.absf %37 : vector<8x256xf32>
    %40 = math.absf %38 : vector<8x256xf32>
    %41 = arith.addf %39, %40 : vector<8x256xf32>
    %c0_12 = arith.constant 0 : index
    %c0_13 = arith.constant 0 : index
    %42 = vector.load %arg3[%c0_12, %c0_13] : memref<8x256xf32, #tpu.memory_space<vmem>>, vector<8x256xf32>
    tpu.vector_store %arg3[%c0_12, %c0_13], %41 {strides = array<i32>} : memref<8x256xf32, #tpu.memory_space<vmem>>, vector<8x256xf32>,
    return
  }
  func.func @transform_0(%arg0: i32) -> (i32, i32) {
    %c0_i32 = arith.constant 0 : i32
    %c0_i32_0 = arith.constant 0 : i32
    %c0_i32_1 = arith.constant 0 : i32
    return %c0_i32, %c0_i32_0 : i32, i32
  }
  func.func @transform_1(%arg0: i32) -> (i32, i32) {
    %c0_i32 = arith.constant 0 : i32
    %c0_i32_0 = arith.constant 0 : i32
    return %arg0, %c0_i32 : i32, i32
  }
  func.func @transform_2(%arg0: i32) -> (i32, i32) {
    %c0_i32 = arith.constant 0 : i32
    %c0_i32_0 = arith.constant 0 : i32
    return %arg0, %c0_i32 : i32, i32
  }
}

</mosaic_0001>

<llo_original>
// kernel: tpu_custom_call.1
$region0: #{tpu_custom_call.1}
  #allocation0 [shape = 'u32[]', space=smem, size = 0x4, offset = 0x4, fixed_abs, tag = 'smem constant byte address 0x4 - core index']
  #allocation1 [shape = 'u32[144,128]{1,0:T(1,128)}', space=vmem, size = 0x12000, scoped, tag = 'internal scratch']
  %s0 = inlined_call_operand.hbm [shape: s32[1,256], index: 0, kind: input, shape index: {}]
  %s1 = inlined_call_operand.hbm [shape: f32[8,256], index: 1, kind: input, shape index: {}]
  %s2 = inlined_call_operand.hbm [shape: f32[8,256], index: 2, kind: output, shape index: {}]
  %s3 = sld [smem:[#allocation0]]
  $region26: #{tpu_custom_call.1} parent=0
    _
  %s5 = ssub.s32 1, %s3
  %s6 = scalar_select 0, %s5, %s3
  $region1: #{tpu_custom_call.1} parent=0
    #allocation2 [shape = 'u8[1024]{0}', space=vmem, size = 0x400, scoped, tag = 'input window, operand 0, single buffered']
    #allocation3 [shape = 's32[1]{0}', space=sflag, size = 0x4, scoped, tag = 'scoped memory for tpu_custom_call.1']
    #allocation4 [shape = 's32[1]{0}', space=sflag, size = 0x4, scoped, tag = 'scoped memory for tpu_custom_call.1']
    #allocation5 [shape = 'u8[8192]{0}', space=vmem, size = 0x2000, scoped, tag = 'input window, operand 1, single buffered']
    #allocation6 [shape = 's32[1]{0}', space=sflag, size = 0x4, scoped, tag = 'scoped memory for tpu_custom_call.1']
    #allocation7 [shape = 'u8[8192]{0}', space=vmem, size = 0x2000, scoped, tag = 'output window, operand 0, single buffered']
    %7 = vsyncpa [#allocation3], 0
    %8 = vsyncpa [#allocation6], 0
    %9 = vsyncpa [#allocation4], 0
    // Predicated region
    $region2: #{tpu_custom_call.1} parent=1 // pred_check
      _
    $region3: #{tpu_custom_call.1} parent=1 // pred_check_branch
      %11 = sbr.rel (0) target = $region5
    $region4: #{tpu_custom_call.1} parent=1 // pred_region
      %s13 = ssub.s32 32, 32
      %14 = vsyncadd [#allocation3], %s13
      %s16 = sshll.u32 [#allocation2], 4
      %s17 = int_to_ptr.vmem [resolvable:$true] %s16
      %19 = dma.hbm_to_vmem [thread:$0]  %s0, 32, %s17, [#allocation3]
    $region5: #{tpu_custom_call.1} parent=1 // pred_fallthru
      _
    // Predicated region
    $region6: #{tpu_custom_call.1} parent=1 // pred_check
      _
    $region7: #{tpu_custom_call.1} parent=1 // pred_check_branch
      %21 = sbr.rel (0) target = $region9
    $region8: #{tpu_custom_call.1} parent=1 // pred_region
      %s23 = ssub.s32 256, 256
      %24 = vsyncadd [#allocation6], %s23
      %s26 = sshll.u32 [#allocation5], 4
      %s27 = int_to_ptr.vmem [resolvable:$true] %s26
      %29 = dma.hbm_to_vmem [thread:$0]  %s1, 256, %s27, [#allocation6]
    $region9: #{tpu_custom_call.1} parent=1 // pred_fallthru
      _
    // Predicated region
    $region10: #{tpu_custom_call.1} parent=1 // pred_check
      _
    $region11: #{tpu_custom_call.1} parent=1 // pred_check_branch
      %31 = sbr.rel (0) target = $region13
    $region12: #{tpu_custom_call.1} parent=1 // pred_region
      %32 = dma.done [#allocation3], 32
    $region13: #{tpu_custom_call.1} parent=1 // pred_fallthru
      _
    // Predicated region
    $region14: #{tpu_custom_call.1} parent=1 // pred_check
      _
    $region15: #{tpu_custom_call.1} parent=1 // pred_check_branch
      %34 = sbr.rel (0) target = $region17
    $region16: #{tpu_custom_call.1} parent=1 // pred_region
      %35 = dma.done [#allocation6], 256
    $region17: #{tpu_custom_call.1} parent=1 // pred_fallthru
      _
    %v36 = vld [vmem:[#allocation5] sm:$0xff]
    %v37 = vld [vmem:[#allocation5 + $0x8] sm:$0xff]
    %v38 = vld [vmem:[#allocation2] sm:$0x3]
    %v39 = vlaneseq
    %v40 = vshrl.u32 %v39, 7
    %v41 = vsub.s32 0, %v40
    %v42 = vrot.slane %v38, %v41
    %v43 = vlaneseq
    %v44 = vshrl.u32 %v43, 7
    %v45 = vsub.s32 1, %v44
    %v46 = vrot.slane %v38, %v45
    %v47 = vlaneseq
    %v48 = vand.u32 %v47, 127
    %v49 = vadd.s32 %v48, 128
    %vm50 = vcmp.gt.s32.totalorder %v42, 0
    %vm51 = vcmp.gt.s32.totalorder %v46, 0
    %vm52 = vcmp.lt.s32.totalorder %v42, 15
    %vm53 = vcmp.lt.s32.totalorder %v46, 15
    %vm54 = vcmp.ge.s32.totalorder %v48, 16
    %vm55 = vcmp.ge.s32.totalorder %v49, 16
    %vm56 = vcmp.lt.s32.totalorder %v48, 240
    %vm57 = vcmp.lt.s32.totalorder %v49, 240
    %58 = vrot.lane.b32.xlu0 %v36, 1
    %v59 = vpop.permute.xlu0 %58
    %60 = vrot.lane.b32.xlu0 %v37, 1
    %v61 = vpop.permute.xlu0 %60
    %vm62 = vcmp.lt.s32.totalorder %v48, 1
    %v63 = vsel %vm62, %v59, %v61
    %v64 = vsel %vm62, %v61, %v59
    %v65 = vsel %vm50, %v64, 0.0
    %v66 = vsel %vm51, %v63, 0.0
    %67 = vrot.lane.b32.xlu0 %v36, 127
    %v68 = vpop.permute.xlu0 %67
    %69 = vrot.lane.b32.xlu0 %v37, 127
    %v70 = vpop.permute.xlu0 %69
    %vm71 = vcmp.lt.s32.totalorder %v48, 127
    %v72 = vsel %vm71, %v68, %v70
    %v73 = vsel %vm71, %v70, %v68
    %v74 = vsel %vm52, %v72, 0.0
    %v75 = vsel %vm53, %v73, 0.0
    %v76 = vsub.f32 %v65, %v74
    %v77 = vsub.f32 %v66, %v75
    %v78 = vadd.f32 %v65, %v74
    %v79 = vadd.f32 %v66, %v75
    %v80 = vadd.f32 %v36, %v36
    %v81 = vadd.f32 %v37, %v37
    %v82 = vadd.f32 %v78, %v80
    %v83 = vadd.f32 %v79, %v81
    %84 = vrot.lane.b32.xlu0 %v76, 16
    %v85 = vpop.permute.xlu0 %84
    %86 = vrot.lane.b32.xlu0 %v77, 16
    %v87 = vpop.permute.xlu0 %86
    %vm88 = vcmp.lt.s32.totalorder %v48, 16
    %v89 = vsel %vm88, %v85, %v87
    %v90 = vsel %vm88, %v87, %v85
    %v91 = vsel %vm54, %v90, 0.0
    %v92 = vsel %vm55, %v89, 0.0
    %93 = vrot.lane.b32.xlu0 %v76, 112
    %v94 = vpop.permute.xlu0 %93
    %95 = vrot.lane.b32.xlu0 %v77, 112
    %v96 = vpop.permute.xlu0 %95
    %vm97 = vcmp.lt.s32.totalorder %v48, 112
    %v98 = vsel %vm97, %v94, %v96
    %v99 = vsel %vm97, %v96, %v94
    %v100 = vsel %vm56, %v98, 0.0
    %v101 = vsel %vm57, %v99, 0.0
    %102 = vrot.lane.b32.xlu0 %v82, 16
    %v103 = vpop.permute.xlu0 %102
    %104 = vrot.lane.b32.xlu0 %v83, 16
    %v105 = vpop.permute.xlu0 %104
    %v106 = vsel %vm88, %v103, %v105
    %v107 = vsel %vm88, %v105, %v103
    %v108 = vsel %vm54, %v107, 0.0
    %v109 = vsel %vm55, %v106, 0.0
    %110 = vrot.lane.b32.xlu0 %v82, 112
    %v111 = vpop.permute.xlu0 %110
    %112 = vrot.lane.b32.xlu0 %v83, 112
    %v113 = vpop.permute.xlu0 %112
    %v114 = vsel %vm97, %v111, %v113
    %v115 = vsel %vm97, %v113, %v111
    %v116 = vsel %vm56, %v114, 0.0
    %v117 = vsel %vm57, %v115, 0.0
    %v118 = vadd.f32 %v91, %v100
    %v119 = vadd.f32 %v92, %v101
    %v120 = vadd.f32 %v76, %v76
    %v121 = vadd.f32 %v77, %v77
    %v122 = vadd.f32 %v118, %v120
    %v123 = vadd.f32 %v119, %v121
    %v124 = vsub.f32 %v108, %v116
    %v125 = vsub.f32 %v109, %v117
    %v126 = vand.u32 2147483647, %v122
    %v127 = vand.u32 2147483647, %v123
    %v128 = vand.u32 2147483647, %v124
    %v129 = vand.u32 2147483647, %v125
    %v130 = vadd.f32 %v126, %v128
    %v131 = vadd.f32 %v127, %v129
    %132 = vst [vmem:[#allocation7] sm:$0xff] %v130
    %133 = vst [vmem:[#allocation7 + $0x8] sm:$0xff] %v131
    // Predicated region
    $region18: #{tpu_custom_call.1} parent=1 // pred_check
      _
    $region19: #{tpu_custom_call.1} parent=1 // pred_check_branch
      %135 = sbr.rel (0) target = $region21
    $region20: #{tpu_custom_call.1} parent=1 // pred_region
      %s137 = ssub.s32 256, 256
      %138 = vsyncadd [#allocation4], %s137
      %s140 = sshll.u32 [#allocation7], 4
      %s141 = int_to_ptr.vmem [resolvable:$true] %s140
      %143 = dma.vmem_to_hbm [thread:$0]  %s141, 256, %s2, [#allocation4]
    $region21: #{tpu_custom_call.1} parent=1 // pred_fallthru
      _
    // Predicated region
    $region22: #{tpu_custom_call.1} parent=1 // pred_check
      _
    $region23: #{tpu_custom_call.1} parent=1 // pred_check_branch
      %145 = sbr.rel (0) target = $region25
    $region24: #{tpu_custom_call.1} parent=1 // pred_region
      %146 = dma.done [#allocation4], 256
    $region25: #{tpu_custom_call.1} parent=1 // pred_fallthru
      _
    %147 = vsyncpa [#allocation3], 1
    %148 = vsyncpa [#allocation6], 1
    %149 = vsyncpa [#allocation4], 1

</llo_original>
